<compile_context>
chip_gen: v7x
topology: tpu7x:2x2x1
jax: 0.10.0
libtpu: 0.0.40
codegen_flags: <defaults>
</compile_context>

<pallas_src>
import jax
import jax.numpy as jnp
from jax.experimental import pallas as pl
from jax.experimental.pallas import tpu as pltpu

_LANE = 128
_SUBLANE = 8


def _latent_classifier_kernel(z_ref, w1_ref, b1_ref, w2_ref, b2_ref, o_ref):
    # z_ref : (TB, D)  VMEM  (streamed batch tile)
    # w1_ref: (D, H)   VMEM  (resident)
    # b1_ref: (1, H)   VMEM  (resident)
    # w2_ref: (H, 1)   VMEM  (resident)
    # b2_ref: (1, 1)   SMEM  (scalar)
    # o_ref : (TB, 1)  VMEM
    z = z_ref[...]

    # Layer 1: MXU matmul with f32 accumulation + bias, ReLU on the VPU.
    h = jnp.dot(z, w1_ref[...], preferred_element_type=jnp.float32) + b1_ref[...]
    h = jnp.maximum(h, 0.0)  # (TB, H)

    # Layer 2: (TB, H) @ (H, 1) -> (TB, 1).  Plain MXU matmul, no h^T relayout.
    logits = jnp.dot(h, w2_ref[...], preferred_element_type=jnp.float32) + b2_ref[0, 0]

    # Sigmoid (exp on the EUP, reciprocal/compose on VPU), store column.
    o_ref[...] = jax.nn.sigmoid(logits).astype(o_ref.dtype)


def _pick_batch_tile(batch, d, hidden):
    """Batch tile from a VMEM byte budget; multiple of 8 (128 when large)."""
    z_row = max(d, _LANE) * 4          # z tile row bytes (lane-padded in VMEM)
    o_row = _LANE * 4                  # (TB, 1) output row bytes (lane-padded)
    h_row = max(hidden, _LANE) * 4     # materialized hidden-activation row bytes
    per_row = 2 * z_row + 2 * o_row + h_row   # z/out double-buffered, h single

    budget = 24 * 1024 * 1024          # tile buffers; well inside v7x's 64 MiB
    tb = min(budget // per_row, 16384)

    # Keep >= 2 grid steps when the batch allows it (v7x 2-TC split + pipelining).
    if batch >= 2 * _LANE:
        tb = min(tb, max(_LANE, (pl.cdiv(batch, 2) // _LANE) * _LANE))

    # Never wider than the sublane-rounded batch.
    tb = min(tb, pl.cdiv(batch, _SUBLANE) * _SUBLANE)

    if tb >= _LANE:
        tb = (tb // _LANE) * _LANE
    else:
        tb = max(_SUBLANE, (tb // _SUBLANE) * _SUBLANE)
    return int(tb)


def latent_classifier(z, w1, b1, w2, b2):
    """Forward pass of LatentClassifier.

    z : (B, D) float32
    w1: (D, 64), b1: (64,), w2: (64, 1), b2: (1,)
    returns (B, 1) float32
    """
    B, D = z.shape
    H = w1.shape[1]  # 64

    TB = _pick_batch_tile(B, D, H)
    n_tiles = pl.cdiv(B, TB)

    b1_row = b1.reshape(1, H)
    w2_col = w2.reshape(H, 1)
    b2_sc = b2.reshape(1, 1)

    # VMEM actually needed (lane-padded): 2x z tile, 2x out tile, 1x h temp, weights.
    vmem_need = (2 * TB * max(D, _LANE)
                 + 2 * TB * _LANE
                 + TB * max(H, _LANE)
                 + max(D, _SUBLANE) * max(H, _LANE)
                 + max(H, _SUBLANE) * _LANE
                 + 2 * _LANE) * 4
    vmem_limit = int(min(48 << 20, max(32 << 20, vmem_need + (8 << 20))))

    cost = pl.CostEstimate(
        flops=2 * B * H * (D + 1),
        transcendentals=B,  # one sigmoid exp per row
        bytes_accessed=(B * D + B + D * H + 2 * H + 1) * 4,
    )

    out = pl.pallas_call(
        _latent_classifier_kernel,
        out_shape=jax.ShapeDtypeStruct((B, 1), jnp.float32),
        grid=(n_tiles,),
        in_specs=[
            pl.BlockSpec((TB, D), lambda i: (i, 0)),            # z: streamed tiles (partial last tile clipped)
            pl.BlockSpec((D, H), lambda i: (0, 0)),             # w1: resident
            pl.BlockSpec((1, H), lambda i: (0, 0)),             # b1: resident
            pl.BlockSpec((H, 1), lambda i: (0, 0)),             # w2: resident
            pl.BlockSpec(memory_space=pltpu.MemorySpace.SMEM),  # b2 scalar in SMEM
        ],
        out_specs=pl.BlockSpec((TB, 1), lambda i: (i, 0)),
        compiler_params=pltpu.CompilerParams(
            dimension_semantics=("parallel",),   # megacore split on v7x
            vmem_limit_bytes=vmem_limit,
        ),
        cost_estimate=cost,
    )(z, w1, b1_row, w2_col, b2_sc)

    return out


def init_params(key, latent_dim, hidden=64):
    """Deterministic init mimicking PyTorch nn.Linear default U(-1/sqrt(fan_in), 1/sqrt(fan_in))."""
    k1, k2, k3, k4 = jax.random.split(key, 4)
    lim1 = 1.0 / jnp.sqrt(latent_dim)
    lim2 = 1.0 / jnp.sqrt(hidden)
    w1 = jax.random.uniform(k1, (latent_dim, hidden), jnp.float32, -lim1, lim1)
    b1 = jax.random.uniform(k2, (hidden,), jnp.float32, -lim1, lim1)
    w2 = jax.random.uniform(k3, (hidden, 1), jnp.float32, -lim2, lim2)
    b2 = jax.random.uniform(k4, (1,), jnp.float32, -lim2, lim2)
    return w1, b1, w2, b2


if __name__ == "__main__":
    key = jax.random.PRNGKey(0)
    k_z, k_p, k_z2 = jax.random.split(key, 3)

    latent_dim = 32
    w1, b1, w2, b2 = init_params(k_p, latent_dim)

    # Primary small case (single partial tile, no padding anywhere).
    B = 2
    z = jax.random.normal(k_z, (B, latent_dim), jnp.float32)
    out = latent_classifier(z, w1, b1, w2, b2)
    jax.block_until_ready(out)
    ref = jax.nn.sigmoid(jnp.maximum(z @ w1 + b1, 0.0) @ w2 + b2)
    assert out.shape == (B, 1)
    assert jnp.allclose(out, ref, atol=5e-5), "mismatch vs reference (B=2)"

    # Multi-tile case with a partial last tile (exercises the no-pad streaming path).
    B2 = 300
    z2 = jax.random.normal(k_z2, (B2, latent_dim), jnp.float32)
    out2 = latent_classifier(z2, w1, b1, w2, b2)
    jax.block_until_ready(out2)
    ref2 = jax.nn.sigmoid(jnp.maximum(z2 @ w1 + b1, 0.0) @ w2 + b2)
    assert out2.shape == (B2, 1)
    assert jnp.allclose(out2, ref2, atol=5e-5), "mismatch vs reference (B=300)"

    print("KERNEL_OK")
</pallas_src>

<mosaic_0001>
module attributes {stable_mosaic.version = 11 : i64} {
  func.func @_latent_classifier_kernel(%arg0: i32, %arg1: memref<8x32xf32, #tpu.memory_space<vmem>>, %arg2: memref<32x64xf32, #tpu.memory_space<vmem>>, %arg3: memref<1x64xf32, #tpu.memory_space<vmem>>, %arg4: memref<64x1xf32, #tpu.memory_space<vmem>>, %arg5: memref<1x1xf32, #tpu.memory_space<smem>>, %arg6: memref<8x1xf32, #tpu.memory_space<vmem>>) attributes {dimension_semantics = [#tpu.dimension_semantics<parallel>], iteration_bounds = array<i64: 1>, scalar_prefetch = 0 : i64, scratch_operands = 0 : i64, tpu.core_type = #tpu.core_type<tc>, window_params = [{transform_indices = @transform_0, window_bounds = array<i64: 8, 32>}, {pipeline_mode = #tpu.pipeline_mode<synchronous>, transform_indices = @transform_1, window_bounds = array<i64: 32, 64>}, {pipeline_mode = #tpu.pipeline_mode<synchronous>, transform_indices = @transform_2, window_bounds = array<i64: 1, 64>}, {pipeline_mode = #tpu.pipeline_mode<synchronous>, transform_indices = @transform_3, window_bounds = array<i64: 64, 1>}, {transform_indices = @transform_4, window_bounds = array<i64: 1, 1>}, {transform_indices = @transform_5, window_bounds = array<i64: 8, 1>}]} {
    %c0 = arith.constant 0 : index
    %c0_0 = arith.constant 0 : index
    %0 = vector.load %arg1[%c0, %c0_0] : memref<8x32xf32, #tpu.memory_space<vmem>>, vector<8x32xf32>
    %c0_1 = arith.constant 0 : index
    %c0_2 = arith.constant 0 : index
    %1 = vector.load %arg2[%c0_1, %c0_2] : memref<32x64xf32, #tpu.memory_space<vmem>>, vector<32x64xf32>
    %cst = arith.constant dense<0.000000e+00> : vector<8x64xf32>
    %2 = tpu.matmul %0, %1, %cst {dimension_numbers = #tpu.dot_dimension_numbers<[1], [0], [0], [1], [0, 0, 1, 1], [], []>} : vector<8x32xf32>, vector<32x64xf32>, vector<8x64xf32> -> vector<8x64xf32>
    %c0_3 = arith.constant 0 : index
    %c0_4 = arith.constant 0 : index
    %3 = vector.load %arg3[%c0_3, %c0_4] : memref<1x64xf32, #tpu.memory_space<vmem>>, vector<1x64xf32>
    %4 = vector.broadcast %3 : vector<1x64xf32> to vector<8x64xf32>
    %5 = arith.addf %2, %4 : vector<8x64xf32>
    %cst_5 = arith.constant 0.000000e+00 : f32
    %6 = vector.broadcast %cst_5 : f32 to vector<8x64xf32>
    %7 = arith.maximumf %5, %6 : vector<8x64xf32>
    %c0_6 = arith.constant 0 : index
    %c0_7 = arith.constant 0 : index
    %8 = vector.load %arg4[%c0_6, %c0_7] : memref<64x1xf32, #tpu.memory_space<vmem>>, vector<64x1xf32>
    %cst_8 = arith.constant dense<0.000000e+00> : vector<8x1xf32>
    %9 = tpu.matmul %7, %8, %cst_8 {dimension_numbers = #tpu.dot_dimension_numbers<[1], [0], [0], [1], [0, 0, 1, 1], [], []>} : vector<8x64xf32>, vector<64x1xf32>, vector<8x1xf32> -> vector<8x1xf32>
    %c0_9 = arith.constant 0 : index
    %c0_10 = arith.constant 0 : index
    %10 = memref.load %arg5[%c0_9, %c0_10] : memref<1x1xf32, #tpu.memory_space<smem>>
    %11 = vector.broadcast %10 : f32 to vector<8x1xf32>
    %12 = arith.addf %9, %11 : vector<8x1xf32>
    %13 = arith.negf %12 : vector<8x1xf32>
    %14 = math.exp %13 : vector<8x1xf32>
    %cst_11 = arith.constant 1.000000e+00 : f32
    %15 = vector.broadcast %cst_11 : f32 to vector<8x1xf32>
    %16 = arith.addf %15, %14 : vector<8x1xf32>
    %17 = arith.divf %15, %16 : vector<8x1xf32>
    %c0_12 = arith.constant 0 : index
    %c0_13 = arith.constant 0 : index
    %18 = vector.load %arg6[%c0_12, %c0_13] : memref<8x1xf32, #tpu.memory_space<vmem>>, vector<8x1xf32>
    tpu.vector_store %arg6[%c0_12, %c0_13], %17 {strides = array<i32>} : memref<8x1xf32, #tpu.memory_space<vmem>>, vector<8x1xf32>,
    return
  }
  func.func @transform_0(%arg0: i32) -> (i32, i32) {
    %c0_i32 = arith.constant 0 : i32
    %c0_i32_0 = arith.constant 0 : i32
    return %arg0, %c0_i32 : i32, i32
  }
  func.func @transform_1(%arg0: i32) -> (i32, i32) {
    %c0_i32 = arith.constant 0 : i32
    %c0_i32_0 = arith.constant 0 : i32
    %c0_i32_1 = arith.constant 0 : i32
    return %c0_i32, %c0_i32_0 : i32, i32
  }
  func.func @transform_2(%arg0: i32) -> (i32, i32) {
    %c0_i32 = arith.constant 0 : i32
    %c0_i32_0 = arith.constant 0 : i32
    %c0_i32_1 = arith.constant 0 : i32
    return %c0_i32, %c0_i32_0 : i32, i32
  }
  func.func @transform_3(%arg0: i32) -> (i32, i32) {
    %c0_i32 = arith.constant 0 : i32
    %c0_i32_0 = arith.constant 0 : i32
    %c0_i32_1 = arith.constant 0 : i32
    return %c0_i32, %c0_i32_0 : i32, i32
  }
  func.func @transform_4(%arg0: i32) -> (i32, i32) {
    %c0_i32 = arith.constant 0 : i32
    %c0_i32_0 = arith.constant 0 : i32
    %c0_i32_1 = arith.constant 0 : i32
    return %c0_i32, %c0_i32_0 : i32, i32
  }
  func.func @transform_5(%arg0: i32) -> (i32, i32) {
    %c0_i32 = arith.constant 0 : i32
    %c0_i32_0 = arith.constant 0 : i32
    return %arg0, %c0_i32 : i32, i32
  }
}

</mosaic_0001>

<llo_original>
// kernel: tpu_custom_call.1
$region0: #{tpu_custom_call.1}
  #allocation0 [shape = 'u32[]', space=smem, size = 0x4, offset = 0x4, fixed_abs, tag = 'smem constant byte address 0x4 - core index']
  #allocation1 [shape = 'u32[144,128]{1,0:T(1,128)}', space=vmem, size = 0x12000, scoped, tag = 'internal scratch']
  #allocation2 [shape = 'f32[1,1]{1,0:T(1,128)S(6)}', space=smem, size = 0x200, scoped, tag = 'scoped memory for tpu_custom_call.1']
  %s0 = inlined_call_operand.vmem [shape: f32[2,32], index: 0, kind: input, shape index: {}]
  %s1 = inlined_call_operand.vmem [shape: f32[32,64], index: 1, kind: input, shape index: {}]
  %s2 = inlined_call_operand.vmem [shape: f32[1,64], index: 2, kind: input, shape index: {}]
  %s3 = inlined_call_operand.vmem [shape: f32[64,1], index: 3, kind: input, shape index: {}]
  %s4 = inlined_call_operand.<no memory space> [shape: f32[1,1], index: 4, kind: input, shape index: {}]
  %s5 = inlined_call_operand.vmem [shape: f32[2,1], index: 5, kind: output, shape index: {}]
  %s6 = sld [smem:[#allocation0]]
  $region60: #{tpu_custom_call.1} parent=0
    _
  %s8 = ssub.s32 1, %s6
  %s9 = scalar_select 0, %s8, %s6
  %10 = sst [smem:[#allocation2]] %s4
  $region1: #{tpu_custom_call.1} parent=0
    #allocation3 [shape = 'u8[4096]{0}', space=vmem, size = 0x1000, scoped, tag = 'output window, operand 0, single buffered']
    // Predicated region
    $region2: #{tpu_custom_call.1} parent=1 // pred_check
      _
    $region3: #{tpu_custom_call.1} parent=1 // pred_check_branch
      %12 = sbr.rel (0) target = $region5
    $region4: #{tpu_custom_call.1} parent=1 // pred_region
      _
    $region5: #{tpu_custom_call.1} parent=1 // pred_fallthru
      _
    // Predicated region
    $region6: #{tpu_custom_call.1} parent=1 // pred_check
      _
    $region7: #{tpu_custom_call.1} parent=1 // pred_check_branch
      %14 = sbr.rel (0) target = $region9
    $region8: #{tpu_custom_call.1} parent=1 // pred_region
      _
    $region9: #{tpu_custom_call.1} parent=1 // pred_fallthru
      _
    // Predicated region
    $region10: #{tpu_custom_call.1} parent=1 // pred_check
      _
    $region11: #{tpu_custom_call.1} parent=1 // pred_check_branch
      %16 = sbr.rel (0) target = $region13
    $region12: #{tpu_custom_call.1} parent=1 // pred_region
      _
    $region13: #{tpu_custom_call.1} parent=1 // pred_fallthru
      _
    // Predicated region
    $region14: #{tpu_custom_call.1} parent=1 // pred_check
      _
    $region15: #{tpu_custom_call.1} parent=1 // pred_check_branch
      %18 = sbr.rel (0) target = $region17
    $region16: #{tpu_custom_call.1} parent=1 // pred_region
      _
    $region17: #{tpu_custom_call.1} parent=1 // pred_fallthru
      _
    // Predicated region
    $region18: #{tpu_custom_call.1} parent=1 // pred_check
      _
    $region19: #{tpu_custom_call.1} parent=1 // pred_check_branch
      %20 = sbr.rel (0) target = $region21
    $region20: #{tpu_custom_call.1} parent=1 // pred_region
      _
    $region21: #{tpu_custom_call.1} parent=1 // pred_fallthru
      _
    %v21 = vld [vmem:[%s0] sm:$0xff]
    %v22 = vld [vmem:[%s1] sm:$0xff]
    %v23 = vld [vmem:[%s1 + $0x8] sm:$0xff]
    %v24 = vld [vmem:[%s1 + $0x10] sm:$0xff]
    %v25 = vld [vmem:[%s1 + $0x18] sm:$0xff]
    %v26 = vld [vmem:[%s2] sm:$0x1]
    %v28 = vlaneseq
    %v29 = vshrl.u32 %v28, 7
    %v30 = vsub.s32 0, %v29
    %v31 = vrot.slane %v26, %v30
    %vm33 = vcmask 261120
    %v35 = vsel %vm33, %v21, 0
    %37 = vmatprep.subr.mxu0 0.0
    %38 = vmatpush1.msra.mxu0 %v22
    %39 = vmatprep.subr.mxu0 0.0
    %40 = vmatpush1.msra.mxu0 %v23
    %41 = vmatprep.subr.mxu0 0.0
    %42 = vmatpush1.msra.mxu0 %v24
    %43 = vmatprep.subr.mxu0 0.0
    %44 = vmatpush1.msra.mxu0 %v25
    %45 = vmatprep.subr.mxu0 0.0
    %46 = vmatpush1.msra.mxu0 0.0
    %47 = vmatprep.subr.mxu0 0.0
    %48 = vmatpush1.msra.mxu0 0.0
    %49 = vmatprep.subr.mxu0 0.0
    %50 = vmatpush1.msra.mxu0 0.0
    %51 = vmatprep.subr.mxu0 0.0
    %52 = vmatpush1.msra.mxu0 0.0
    %53 = vmatprep.subr.mxu0 0.0
    %54 = vmatpush1.msra.mxu0 0.0
    %55 = vmatprep.subr.mxu0 0.0
    %56 = vmatpush1.msra.mxu0 0.0
    %57 = vmatprep.subr.mxu0 0.0
    %58 = vmatpush1.msra.mxu0 0.0
    %59 = vmatprep.subr.mxu0 0.0
    %60 = vmatpush1.msra.mxu0 0.0
    %61 = vmatprep.subr.mxu0 0.0
    %62 = vmatpush1.msra.mxu0 0.0
    %63 = vmatprep.subr.mxu0 0.0
    %64 = vmatpush1.msra.mxu0 0.0
    %65 = vmatprep.subr.mxu0 0.0
    %66 = vmatpush1.msra.mxu0 0.0
    %67 = vmatprep.subr.mxu0 0.0
    %68 = vmatpush1.msra.mxu0 0.0
    %69 = vmatprep.subr.mxu0 0.0
    %70 = vmatpush1.msra.mxu0 0.0
    %71 = vmatprep.subr.mxu0 0.0
    %72 = vmatpush1.msra.mxu0 0.0
    %73 = vmatprep.subr.mxu0 0.0
    %74 = vmatpush1.msra.mxu0 0.0
    %75 = vmatprep.subr.mxu0 0.0
    %76 = vmatpush1.msra.mxu0 0.0
    %77 = vmatprep.subr.mxu0 0.0
    %78 = vmatpush1.msra.mxu0 0.0
    %79 = vmatprep.subr.mxu0 0.0
    %80 = vmatpush1.msra.mxu0 0.0
    %81 = vmatprep.subr.mxu0 0.0
    %82 = vmatpush1.msra.mxu0 0.0
    %83 = vmatprep.subr.mxu0 0.0
    %84 = vmatpush1.msra.mxu0 0.0
    %85 = vmatprep.subr.mxu0 0.0
    %86 = vmatpush1.msra.mxu0 0.0
    %87 = vmatprep.subr.mxu0 0.0
    %88 = vmatpush1.msra.mxu0 0.0
    %89 = vmatprep.subr.mxu0 0.0
    %90 = vmatpush1.msra.mxu0 0.0
    %91 = vmatprep.subr.mxu0 0.0
    %92 = vmatpush1.msra.mxu0 0.0
    %93 = vmatprep.subr.mxu0 0.0
    %94 = vmatpush1.msra.mxu0 0.0
    %95 = vmatprep.subr.mxu0 0.0
    %96 = vmatpush1.msra.mxu0 0.0
    %97 = vmatprep.subr.mxu0 0.0
    %98 = vmatpush1.msra.mxu0 0.0
    %99 = vmatprep.subr.mxu0 0.0
    %100 = vmatpush1.msra.mxu0 0.0
    %101 = vmatprep.mubr.f32.mxu0 0.0
    %102 = vmatmul.mubr.f32.gmra.mrb[0].mxu0 %v35
    %v103 = vpop.f32.mrb[0].mxu0
    %v104 = vadd.f32 %v31, %v103
    %v105 = vpop.f32.mrb[0].mxu0
    %106 = vdwg.mxu0
    %v107 = vmax.f32 %v104, 0.0
    %v108 = vld [vmem:[%s3] sm:$0xff]
    %v109 = vld [vmem:[%s3 + $0x8] sm:$0xff]
    %v110 = vld [vmem:[%s3 + $0x10] sm:$0xff]
    %v111 = vld [vmem:[%s3 + $0x18] sm:$0xff]
    %v112 = vld [vmem:[%s3 + $0x20] sm:$0xff]
    %v113 = vld [vmem:[%s3 + $0x28] sm:$0xff]
    %v114 = vld [vmem:[%s3 + $0x30] sm:$0xff]
    %v115 = vld [vmem:[%s3 + $0x38] sm:$0xff]
    %s116 = sld [smem:[#allocation2]]
    %v117 = vstv %s116
    %vm118 = vcmask 523264
    %v120 = vsel %vm118, %v107, 0
    %122 = vmatprep.subr.mxu0 0.0
    %123 = vmatpush1.msra.mxu0 %v108
    %124 = vmatprep.subr.mxu0 0.0
    %125 = vmatpush1.msra.mxu0 %v109
    %126 = vmatprep.subr.mxu0 0.0
    %127 = vmatpush1.msra.mxu0 %v110
    %128 = vmatprep.subr.mxu0 0.0
    %129 = vmatpush1.msra.mxu0 %v111
    %130 = vmatprep.subr.mxu0 0.0
    %131 = vmatpush1.msra.mxu0 %v112
    %132 = vmatprep.subr.mxu0 0.0
    %133 = vmatpush1.msra.mxu0 %v113
    %134 = vmatprep.subr.mxu0 0.0
    %135 = vmatpush1.msra.mxu0 %v114
    %136 = vmatprep.subr.mxu0 0.0
    %137 = vmatpush1.msra.mxu0 %v115
    %138 = vmatprep.subr.mxu0 0.0
    %139 = vmatpush1.msra.mxu0 0.0
    %140 = vmatprep.subr.mxu0 0.0
    %141 = vmatpush1.msra.mxu0 0.0
    %142 = vmatprep.subr.mxu0 0.0
    %143 = vmatpush1.msra.mxu0 0.0
    %144 = vmatprep.subr.mxu0 0.0
    %145 = vmatpush1.msra.mxu0 0.0
    %146 = vmatprep.subr.mxu0 0.0
    %147 = vmatpush1.msra.mxu0 0.0
    %148 = vmatprep.subr.mxu0 0.0
    %149 = vmatpush1.msra.mxu0 0.0
    %150 = vmatprep.subr.mxu0 0.0
    %151 = vmatpush1.msra.mxu0 0.0
    %152 = vmatprep.subr.mxu0 0.0
    %153 = vmatpush1.msra.mxu0 0.0
    %154 = vmatprep.subr.mxu0 0.0
    %155 = vmatpush1.msra.mxu0 0.0
    %156 = vmatprep.subr.mxu0 0.0
    %157 = vmatpush1.msra.mxu0 0.0
    %158 = vmatprep.subr.mxu0 0.0
    %159 = vmatpush1.msra.mxu0 0.0
    %160 = vmatprep.subr.mxu0 0.0
    %161 = vmatpush1.msra.mxu0 0.0
    %162 = vmatprep.subr.mxu0 0.0
    %163 = vmatpush1.msra.mxu0 0.0
    %164 = vmatprep.subr.mxu0 0.0
    %165 = vmatpush1.msra.mxu0 0.0
    %166 = vmatprep.subr.mxu0 0.0
    %167 = vmatpush1.msra.mxu0 0.0
    %168 = vmatprep.subr.mxu0 0.0
    %169 = vmatpush1.msra.mxu0 0.0
    %170 = vmatprep.subr.mxu0 0.0
    %171 = vmatpush1.msra.mxu0 0.0
    %172 = vmatprep.subr.mxu0 0.0
    %173 = vmatpush1.msra.mxu0 0.0
    %174 = vmatprep.subr.mxu0 0.0
    %175 = vmatpush1.msra.mxu0 0.0
    %176 = vmatprep.subr.mxu0 0.0
    %177 = vmatpush1.msra.mxu0 0.0
    %178 = vmatprep.subr.mxu0 0.0
    %179 = vmatpush1.msra.mxu0 0.0
    %180 = vmatprep.subr.mxu0 0.0
    %181 = vmatpush1.msra.mxu0 0.0
    %182 = vmatprep.subr.mxu0 0.0
    %183 = vmatpush1.msra.mxu0 0.0
    %184 = vmatprep.subr.mxu0 0.0
    %185 = vmatpush1.msra.mxu0 0.0
    %186 = vmatprep.mubr.f32.mxu0 0.0
    %187 = vmatmul.mubr.f32.gmra.mrb[0].mxu0 %v120
    %v188 = vpop.f32.mrb[0].mxu0
    %v189 = vadd.f32 %v117, %v188
    %v190 = vpop.f32.mrb[0].mxu0
    %191 = vdwg.mxu0
    %v192 = vxor.u32 %v189, 2147483648
    %v193 = vmul.f32 %v192, 1.442695
    %v194 = vpow.pop %v193
    %v195 = vadd.f32 %v194, 1.0
    %v196 = vrcp.pop %v195
    %v197 = vmul.f32 1.0, %v196
    %vm198 = vcmask 7168
    %199 = vst.msk [vmem:[#allocation3] sm:$0xff] %vm198, %v197
    // Predicated region
    $region22: #{tpu_custom_call.1} parent=1 // pred_check
      _
    $region23: #{tpu_custom_call.1} parent=1 // pred_check_branch
      %201 = sbr.rel (0) target = $region25
    $region24: #{tpu_custom_call.1} parent=1 // pred_region
      // Predicated region
      $region26: #{tpu_custom_call.1} parent=24 // pred_check
        _
      $region27: #{tpu_custom_call.1} parent=24 // pred_check_branch
        %203 = sbr.rel (0) target = $region29
      $region28: #{tpu_custom_call.1} parent=24 // pred_region
        // Predicated region
        $region30: #{tpu_custom_call.1} parent=28 // pred_check
          _
        $region31: #{tpu_custom_call.1} parent=28 // pred_check_branch
          %205 = sbr.rel target = $region33
        $region32: #{tpu_custom_call.1} parent=28 // pred_region
          // Predicated region
          $region45: #{tpu_custom_call.1} parent=32 // pred_check
            _
          $region46: #{tpu_custom_call.1} parent=32 // pred_check_branch
            %220 = sbr.rel (0) target = $region48
          $region47: #{tpu_custom_call.1} parent=32 // pred_region
            loop: start=0, step=1, limit=1
            $region49: #{tpu_custom_call.1} parent=47 // loop_pre_header
              _
            $region50: #{tpu_custom_call.1} parent=47 // loop_header
              %s223 = sphi 0, %s227
              %p224 = scmp.ge.s32.totalorder %s223, 1
              %s228 = sphi [#allocation3], [#allocation3]
              %s229 = sphi %s5, %s5
            $region51: #{tpu_custom_call.1} parent=47 // loop_header_branch
              %226 = sbr.rel (%p224) target = $region55
            $region52: #{tpu_custom_call.1} parent=47 // loop_body
              %v230 = vld [vmem:[%s228] sm:$0x3]
              %231 = vst [vmem:[%s229] sm:$0x3] %v230
            $region53: #{tpu_custom_call.1} parent=47 // loop_footer
              %s227 = sadd.s32 1, %s223
            $region54: #{tpu_custom_call.1} parent=47 // loop_footer_branch
              %222 = sbr.rel target = $region50
            $region55: #{tpu_custom_call.1} parent=47 // loop_exit
              _
          $region48: #{tpu_custom_call.1} parent=32 // pred_fallthru
            _
        $region33: #{tpu_custom_call.1} parent=28 // pred_fallthru
          _
        // Predicated region
        $region34: #{tpu_custom_call.1} parent=28 // pred_check
          _
        $region35: #{tpu_custom_call.1} parent=28 // pred_check_branch
          %207 = sbr.rel (0) target = $region37
        $region36: #{tpu_custom_call.1} parent=28 // pred_region
          loop: start=0, step=1, limit=1
          $region38: #{tpu_custom_call.1} parent=36 // loop_pre_header
            _
          $region39: #{tpu_custom_call.1} parent=36 // loop_header
            %s210 = sphi 0, %s214
            %p211 = scmp.ge.s32.totalorder %s210, 1
            %s215 = sphi [#allocation3], [#allocation3]
            %s216 = sphi %s5, %s5
          $region40: #{tpu_custom_call.1} parent=36 // loop_header_branch
            %213 = sbr.rel (%p211) target = $region44
          $region41: #{tpu_custom_call.1} parent=36 // loop_body
            %v217 = vld [vmem:[%s215] sm:$0x3]
            %218 = vst [vmem:[%s216] sm:$0x3] %v217
          $region42: #{tpu_custom_call.1} parent=36 // loop_footer
            %s214 = sadd.s32 1, %s210
          $region43: #{tpu_custom_call.1} parent=36 // loop_footer_branch
            %209 = sbr.rel target = $region39
          $region44: #{tpu_custom_call.1} parent=36 // loop_exit
            _
        $region37: #{tpu_custom_call.1} parent=28 // pred_fallthru
          _
      $region29: #{tpu_custom_call.1} parent=24 // pred_fallthru
        _
      %232 = vnop
    $region25: #{tpu_custom_call.1} parent=1 // pred_fallthru
      _
    // Predicated region
    $region56: #{tpu_custom_call.1} parent=1 // pred_check
      _
    $region57: #{tpu_custom_call.1} parent=1 // pred_check_branch
      %234 = sbr.rel (0) target = $region59
    $region58: #{tpu_custom_call.1} parent=1 // pred_region
      _
    $region59: #{tpu_custom_call.1} parent=1 // pred_fallthru
      _

</llo_original>
